<compile_context>
chip_gen: v5e
topology: v5e:2x2
jax: 0.10.0
libtpu: 0.0.40
codegen_flags: <defaults>
</compile_context>

<pallas_src>
import functools

import jax
import jax.numpy as jnp
from jax.experimental import pallas as pl
from jax.experimental.pallas import tpu as pltpu


def _round_up(x, m):
    return ((x + m - 1) // m) * m


def _vmem_limit_bytes():
    """Generation-aware scoped-VMEM request (~half of physical, capped)."""
    try:
        cap = int(pltpu.get_tpu_info().vmem_capacity_bytes)
    except Exception:
        cap = 64 << 20          # conservative fallback (v7x per-TensorCore VMEM)
    return max(16 << 20, min(cap // 2, 80 << 20))


def _pick_channel_tile(c_pad):
    """Largest lane-aligned channel tile <= 512 that divides C_pad (bounds per-step
    VMEM for big filter banks and gives v7x a second parallel grid axis)."""
    for tc in (512, 384, 256, 128):
        if c_pad % tc == 0:
            return tc
    return c_pad


def _vmem_bytes_estimate(tb, l_pad, d, kh_max, k_rows, tc, n_mask):
    """Conservative per-step VMEM estimate: double-buffered pipeline blocks plus the
    in-kernel intermediates.  Minor dims lane-pad to 128 in VMEM (D=16 -> 128)."""
    lane_d = _round_up(d, 128)
    lane_k = _round_up(k_rows, 128)
    lane_c = _round_up(tc, 128)
    x_blk = tb * _round_up(l_pad, 16) * lane_d * 2             # bf16 activations
    w_blk = _round_up(k_rows, 16) * lane_c * 2                 # bf16 fused weights
    b_blk = 8 * lane_c * 4                                     # f32 bias
    m_blk = _round_up(n_mask, 8) * lane_c * 4                  # f32 tail mask
    o_blk = _round_up(tb, 8) * lane_c * 4                      # f32 output
    pipelined = 2 * (x_blk + w_blk + b_blk + m_blk + o_blk)    # double buffering

    rows = tb * l_pad
    inter = (rows * lane_d * 4                                 # f32 upcast of x tile
             + (kh_max - 1) * rows * lane_d * 4                # rolled f32 taps
             + rows * lane_k * (4 + 2)                         # f32 concat LHS + bf16 cast
             + rows * lane_c * 4                               # f32 matmul result y
             + tb * _round_up(n_mask, 8) * lane_c * 4)         # masked tail slice
    return pipelined + (inter * 5) // 4                        # 25% headroom


def _pick_batch_tile(batch, l_pad, d, kh_max, k_rows, tc, n_mask, *, budget,
                     n_chan_steps):
    """Largest batch tile whose per-step VMEM estimate fits the budget."""
    b_cap = _round_up(max(batch, 1), 8)
    tb = 8
    for cand in (2048, 1024, 512, 256, 128, 64, 32, 16, 8):
        if cand <= b_cap and _vmem_bytes_estimate(
                cand, l_pad, d, kh_max, k_rows, tc, n_mask) <= budget:
            tb = cand
            break
    # v7x has two TensorCores: prefer >= 2 steps on the "parallel" grid axes so both
    # get work (no-op when the channel axis already provides a second step).
    if n_chan_steps == 1 and batch > 8 and _round_up(batch, tb) // tb < 2:
        tb = max(tb // 2, 8)
    return tb


def _char_cnn_fused_kernel(x_ref, w_ref, b_ref, m_ref, o_ref, *, kh_max, mask_start):
    """Fused CharCNN forward for one (batch tile, channel tile).

    x_ref: (TB, L_pad, D)      bf16 zero-padded embedded chars
    w_ref: (kh_max*D, TC)      bf16 fused conv weights (row block k = tap-k weights)
    b_ref: (1, TC)             f32 fused bias
    m_ref: (L_pad - mask_start, TC)  f32 additive mask for the tail time rows
                               (0 where valid, -1e30 where the conv window is invalid)
    o_ref: (TB, TC)            f32 per-word character representation (lane dense)
    """
    tb, l_pad, d = x_ref.shape
    k_rows, tc = w_ref.shape
    n = tb * l_pad

    # Build the K = kh_max*D matmul LHS: kh_max time-shifted copies of x concatenated
    # on the lane axis.  Upcast to f32 first so the sublane rotate / unaligned lane
    # concat stay on the best-supported 32-bit paths; the MXU is fed bf16 (exact cast,
    # values are already bf16) with f32 accumulation.
    x32 = x_ref[...].astype(jnp.float32).reshape(n, d)
    taps = [x32]
    for k in range(1, kh_max):
        # pltpu.roll == jnp.roll: shift by n-k  <=>  row r picks up row (r + k) mod n.
        # Rows where the wrap crosses a word (or batch) boundary are invalid conv
        # positions and are killed by the tail mask before the max.
        taps.append(pltpu.roll(x32, shift=n - k, axis=0))
    lhs = (jnp.concatenate(taps, axis=-1) if kh_max > 1 else x32).astype(jnp.bfloat16)

    # Single MXU matmul: already-summed conv response for every (time, channel).
    y = jnp.dot(lhs, w_ref[...], preferred_element_type=jnp.float32)
    y = y.reshape(tb, l_pad, tc)

    # Mask only the tail rows that can be invalid, max-pool over time, then bias+tanh
    # on the pooled tile only (tanh monotonic, so max/tanh commute).
    masked = y[:, mask_start:, :] + m_ref[...][None, :, :]
    pooled = jnp.max(masked, axis=1)                           # (TB, TC)
    if mask_start > 0:
        pooled = jnp.maximum(pooled, jnp.max(y[:, :mask_start, :], axis=1))
    o_ref[...] = jnp.tanh(pooled + b_ref[...])


def char_cnn_fused(x_pad, w_fused, b_fused, time_mask, *, tb, tc, kh_max, mask_start,
                   vmem_limit_bytes):
    b_pad, l_pad, d = x_pad.shape
    k_rows, c_pad = w_fused.shape
    n_mask = time_mask.shape[0]
    grid = (b_pad // tb, c_pad // tc)

    kernel = functools.partial(_char_cnn_fused_kernel, kh_max=kh_max,
                               mask_start=mask_start)

    cost = pl.CostEstimate(
        flops=2 * b_pad * l_pad * k_rows * c_pad,
        transcendentals=b_pad * c_pad,
        bytes_accessed=(2 * (b_pad * l_pad * d + k_rows * c_pad)        # bf16 streams
                        + 4 * (c_pad + n_mask * c_pad + b_pad * c_pad)),
    )

    return pl.pallas_call(
        kernel,
        out_shape=jax.ShapeDtypeStruct((b_pad, c_pad), jnp.float32),
        grid=grid,
        in_specs=[
            pl.BlockSpec((tb, l_pad, d), lambda i, j: (i, 0, 0)),   # batch-tiled acts
            pl.BlockSpec((k_rows, tc), lambda i, j: (0, j)),        # fused conv weights
            pl.BlockSpec((1, tc), lambda i, j: (0, j)),             # fused bias
            pl.BlockSpec((n_mask, tc), lambda i, j: (0, j)),        # tail validity mask
        ],
        out_specs=pl.BlockSpec((tb, tc), lambda i, j: (i, j)),      # lane-dense output
        compiler_params=pltpu.CompilerParams(
            dimension_semantics=("parallel", "parallel"),
            vmem_limit_bytes=vmem_limit_bytes),
        cost_estimate=cost,
    )(x_pad, w_fused, b_fused, time_mask)


class CharCNN:
    """JAX/Pallas port of the PyTorch CharCNN module (eval-mode forward)."""

    def __init__(self, embedding_num, embedding_dim, filters,
                 dropout=0.0, padding_idx=0, key=None):
        self.embedding_num = embedding_num
        self.embedding_dim = embedding_dim
        self.filters = list(filters)
        self.output_size = sum(c for _, c in self.filters)
        self.dropout = dropout

        self.kh_max = max(kh for kh, _ in self.filters)
        self.kh_min = min(kh for kh, _ in self.filters)
        self.c_pad = _round_up(max(self.output_size, 1), 128)

        key = jax.random.PRNGKey(0) if key is None else key
        keys = jax.random.split(key, 1 + 2 * len(self.filters))

        # nn.Embedding(embedding_num, embedding_dim, padding_idx=padding_idx), stored
        # in bf16 (halves the HBM stream feeding the kernel; accumulation stays f32).
        emb = 0.1 * jax.random.normal(keys[0], (embedding_num, embedding_dim),
                                      jnp.float32)
        self.char_embed = emb.astype(jnp.bfloat16).at[padding_idx].set(0)

        # Per-filter Conv2d(1, C, (kh, D)) weights as (kh, D, C) bf16; bias f32.
        self.conv_params = []
        for i, (kh, c) in enumerate(self.filters):
            w = 0.1 * jax.random.normal(keys[1 + 2 * i], (kh, embedding_dim, c),
                                        jnp.float32)
            b = 0.1 * jax.random.normal(keys[2 + 2 * i], (c,), jnp.float32)
            self.conv_params.append((kh, w.astype(jnp.bfloat16), b))

        # Fused weight (kh_max*D, C_pad): row block k holds every filter's tap-k weight
        # (zero rows for taps k >= kh_i, zero columns for channel padding), so a single
        # K = kh_max*D matmul emits the already-summed conv response.
        d = embedding_dim
        w_fused = jnp.zeros((self.kh_max * d, self.c_pad), jnp.float32)
        b_fused = jnp.zeros((1, self.c_pad), jnp.float32)
        off = 0
        for kh, w, b in self.conv_params:
            c = w.shape[-1]
            for k in range(kh):
                w_fused = w_fused.at[k * d:(k + 1) * d, off:off + c].set(
                    w[k].astype(jnp.float32))
            b_fused = b_fused.at[0, off:off + c].set(b)
            off += c
        self.w_fused = w_fused.astype(jnp.bfloat16)   # exact: entries already bf16
        self.b_fused = b_fused

    def _time_mask(self, seq_len, l_pad, mask_start):
        """(l_pad - mask_start, C_pad) additive mask: row r is time t = mask_start + r;
        -1e30 where t is not a valid conv position for that channel's filter."""
        n_rows = l_pad - mask_start
        mask = jnp.zeros((n_rows, self.c_pad), jnp.float32)
        off = 0
        for kh, c in self.filters:
            first_invalid = seq_len - kh + 1
            start = max(first_invalid - mask_start, 0)
            if start < n_rows:
                mask = mask.at[start:, off:off + c].set(-1e30)
            off += c
        return mask

    def __call__(self, inputs):
        # inputs: (B, L) int32 char indices
        batch, seq_len = inputs.shape
        if seq_len < self.kh_max:
            raise ValueError("sequence length must be >= largest filter height")

        d = self.embedding_dim
        l_pad = _round_up(seq_len, 8)
        mask_start = max(0, min(((seq_len - self.kh_max + 1) // 8) * 8, l_pad - 8))
        n_mask = l_pad - mask_start
        k_rows = self.kh_max * d

        tc = _pick_channel_tile(self.c_pad)
        n_chan_steps = self.c_pad // tc
        vmem_limit = _vmem_limit_bytes()
        tb = _pick_batch_tile(batch, l_pad, d, self.kh_max, k_rows, tc, n_mask,
                              budget=vmem_limit * 4 // 5, n_chan_steps=n_chan_steps)
        b_pad = _round_up(batch, tb)

        # Embedding lookup + padding in glue; bf16 halves this HBM round trip.
        # TODO(synk): fuse the gather into the kernel (scalar-prefetch indices + DMA /
        # one-hot gather of char_embed rows) to drop the (B, L, D) HBM materialization
        # entirely -- the main remaining HBM win on v5e.
        x = jnp.take(self.char_embed, inputs, axis=0)            # (B, L, D) bf16
        x = jnp.pad(x, ((0, b_pad - batch), (0, l_pad - seq_len), (0, 0)))
        mask = self._time_mask(seq_len, l_pad, mask_start)

        out = char_cnn_fused(x, self.w_fused, self.b_fused, mask,
                             tb=tb, tc=tc, kh_max=self.kh_max, mask_start=mask_start,
                             vmem_limit_bytes=vmem_limit)
        # Dropout with p=0 (eval mode) is identity.
        # TODO(synk): training-mode dropout (random mask) not implemented.
        return out[:batch, :self.output_size]


def _reference_forward(model, inputs):
    """Pure-JAX reference mirroring the PyTorch forward (same bf16-rounded params)."""
    x = jnp.take(model.char_embed, inputs, axis=0).astype(jnp.float32)   # (B, L, D)
    batch, seq_len, _ = x.shape
    outs = []
    for kh, w, b in model.conv_params:
        w = w.astype(jnp.float32)
        l_out = seq_len - kh + 1
        s = jnp.zeros((batch, l_out, w.shape[-1]), jnp.float32)
        for k in range(kh):
            s = s + jnp.einsum("btd,dc->btc", x[:, k:k + l_out, :], w[k])
        s = jnp.tanh(s + b[None, None, :])
        outs.append(jnp.max(s, axis=1))
    return jnp.concatenate(outs, axis=1)


if __name__ == "__main__":
    B, L = 2, 8                       # batch of words, chars per word
    embedding_num, embedding_dim = 20, 16
    filters = [(2, 8), (3, 16)]       # (kernel_height, out_channels) -> output_size=24

    key = jax.random.PRNGKey(0)
    k_model, k_inputs = jax.random.split(key)

    model = CharCNN(embedding_num, embedding_dim, filters, key=k_model)
    inputs = jax.random.randint(k_inputs, (B, L), 0, embedding_num, dtype=jnp.int32)

    out = jax.block_until_ready(model(inputs))

    ref = _reference_forward(model, inputs)
    assert out.shape == (B, model.output_size), out.shape
    assert jnp.allclose(out, ref, atol=2e-5, rtol=2e-5), \
        "Pallas output mismatch vs reference"

    print("KERNEL_OK")
</pallas_src>

<mosaic_0001>
module attributes {stable_mosaic.version = 11 : i64} {
  func.func @_char_cnn_fused_kernel(%arg0: i32, %arg1: i32, %arg2: memref<8x8x16xbf16, #tpu.memory_space<vmem>>, %arg3: memref<48x128xbf16, #tpu.memory_space<vmem>>, %arg4: memref<1x128xf32, #tpu.memory_space<vmem>>, %arg5: memref<8x128xf32, #tpu.memory_space<vmem>>, %arg6: memref<8x128xf32, #tpu.memory_space<vmem>>) attributes {dimension_semantics = [#tpu.dimension_semantics<parallel>, #tpu.dimension_semantics<parallel>], iteration_bounds = array<i64: 1, 1>, scalar_prefetch = 0 : i64, scratch_operands = 0 : i64, tpu.core_type = #tpu.core_type<tc>, window_params = [{transform_indices = @transform_0, window_bounds = array<i64: 8, 8, 16>}, {transform_indices = @transform_1, window_bounds = array<i64: 48, 128>}, {transform_indices = @transform_2, window_bounds = array<i64: 1, 128>}, {transform_indices = @transform_3, window_bounds = array<i64: 8, 128>}, {transform_indices = @transform_4, window_bounds = array<i64: 8, 128>}]} {
    %c0 = arith.constant 0 : index
    %c0_0 = arith.constant 0 : index
    %c0_1 = arith.constant 0 : index
    %0 = vector.load %arg2[%c0, %c0_0, %c0_1] : memref<8x8x16xbf16, #tpu.memory_space<vmem>>, vector<8x8x16xbf16>
    %1 = arith.extf %0 : vector<8x8x16xbf16> to vector<8x8x16xf32>
    %2 = vector.shape_cast %1 : vector<8x8x16xf32> to vector<64x16xf32>
    %c63_i32 = arith.constant 63 : i32
    %3 = tpu.dynamic_rotate %2 by %c63_i32 dim 0 : vector<64x16xf32>, i32 -> vector<64x16xf32>
    %c62_i32 = arith.constant 62 : i32
    %4 = tpu.dynamic_rotate %2 by %c62_i32 dim 0 : vector<64x16xf32>, i32 -> vector<64x16xf32>
    %5 = tpu.concatenate %2, %3, %4 in 1 : vector<64x16xf32>, vector<64x16xf32>, vector<64x16xf32> -> vector<64x48xf32>
    %6 = arith.truncf %5 : vector<64x48xf32> to vector<64x48xbf16>
    %c0_2 = arith.constant 0 : index
    %c0_3 = arith.constant 0 : index
    %7 = vector.load %arg3[%c0_2, %c0_3] : memref<48x128xbf16, #tpu.memory_space<vmem>>, vector<48x128xbf16>
    %cst = arith.constant dense<0.000000e+00> : vector<64x128xf32>
    %8 = tpu.matmul %6, %7, %cst {dimension_numbers = #tpu.dot_dimension_numbers<[1], [0], [0], [1], [0, 0, 1, 1], [], []>} : vector<64x48xbf16>, vector<48x128xbf16>, vector<64x128xf32> -> vector<64x128xf32>
    %9 = vector.shape_cast %8 : vector<64x128xf32> to vector<8x8x128xf32>
    %c0_4 = arith.constant 0 : index
    %c0_5 = arith.constant 0 : index
    %10 = vector.load %arg5[%c0_4, %c0_5] : memref<8x128xf32, #tpu.memory_space<vmem>>, vector<8x128xf32>
    %11 = vector.shape_cast %10 : vector<8x128xf32> to vector<1x8x128xf32>
    %12 = vector.broadcast %11 : vector<1x8x128xf32> to vector<8x8x128xf32>
    %13 = arith.addf %9, %12 : vector<8x8x128xf32>
    %cst_6 = arith.constant dense<0xFF800000> : vector<8x128xf32>
    %14 = vector.multi_reduction <maximumf>, %13, %cst_6 [1] : vector<8x8x128xf32> to vector<8x128xf32>
    %c0_7 = arith.constant 0 : index
    %c0_8 = arith.constant 0 : index
    %15 = vector.load %arg4[%c0_7, %c0_8] : memref<1x128xf32, #tpu.memory_space<vmem>>, vector<1x128xf32>
    %16 = vector.broadcast %15 : vector<1x128xf32> to vector<8x128xf32>
    %17 = arith.addf %14, %16 : vector<8x128xf32>
    %18 = math.tanh %17 : vector<8x128xf32>
    %c0_9 = arith.constant 0 : index
    %c0_10 = arith.constant 0 : index
    %19 = vector.load %arg6[%c0_9, %c0_10] : memref<8x128xf32, #tpu.memory_space<vmem>>, vector<8x128xf32>
    tpu.vector_store %arg6[%c0_9, %c0_10], %18 {strides = array<i32>} : memref<8x128xf32, #tpu.memory_space<vmem>>, vector<8x128xf32>,
    return
  }
  func.func @transform_0(%arg0: i32, %arg1: i32) -> (i32, i32, i32) {
    %c0_i32 = arith.constant 0 : i32
    %c0_i32_0 = arith.constant 0 : i32
    %c0_i32_1 = arith.constant 0 : i32
    return %arg0, %c0_i32, %c0_i32_0 : i32, i32, i32
  }
  func.func @transform_1(%arg0: i32, %arg1: i32) -> (i32, i32) {
    %c0_i32 = arith.constant 0 : i32
    %c0_i32_0 = arith.constant 0 : i32
    return %c0_i32, %arg1 : i32, i32
  }
  func.func @transform_2(%arg0: i32, %arg1: i32) -> (i32, i32) {
    %c0_i32 = arith.constant 0 : i32
    %c0_i32_0 = arith.constant 0 : i32
    return %c0_i32, %arg1 : i32, i32
  }
  func.func @transform_3(%arg0: i32, %arg1: i32) -> (i32, i32) {
    %c0_i32 = arith.constant 0 : i32
    %c0_i32_0 = arith.constant 0 : i32
    return %c0_i32, %arg1 : i32, i32
  }
  func.func @transform_4(%arg0: i32, %arg1: i32) -> (i32, i32) {
    %c0_i32 = arith.constant 0 : i32
    return %arg0, %arg1 : i32, i32
  }
}

</mosaic_0001>

<llo_original>
// kernel: tpu_custom_call.1
$region0: #{tpu_custom_call.1}
  #allocation0 [shape = 'u32[]', space=smem, size = 0x4, offset = 0x4, fixed_abs, tag = 'smem constant byte address 0x4 - core index']
  #allocation1 [shape = 'u32[72,128]{1,0:T(1,128)}', space=vmem, size = 0x9000, scoped, tag = 'internal scratch']
  %s0 = inlined_call_operand.hbm [shape: bf16[8,8,16], index: 0, kind: input, shape index: {}]
  %s1 = inlined_call_operand.hbm [shape: bf16[48,128], index: 1, kind: input, shape index: {}]
  %s2 = inlined_call_operand.vmem [shape: f32[1,128], index: 2, kind: input, shape index: {}]
  %s3 = inlined_call_operand.hbm [shape: f32[8,128], index: 3, kind: input, shape index: {}]
  %s4 = inlined_call_operand.hbm [shape: f32[8,128], index: 4, kind: output, shape index: {}]
  %s5 = sld [smem:[#allocation0]]
  $region38: #{tpu_custom_call.1} parent=0
    _
  %s7 = ssub.s32 1, %s5
  %s8 = scalar_select 0, %s7, %s5
  $region1: #{tpu_custom_call.1} parent=0
    #allocation2 [shape = 'u8[16384]{0}', space=vmem, size = 0x4000, scoped, tag = 'input window, operand 0, single buffered']
    #allocation3 [shape = 's32[1]{0}', space=sflag, size = 0x4, scoped, tag = 'scoped memory for tpu_custom_call.1']
    #allocation4 [shape = 's32[1]{0}', space=sflag, size = 0x4, scoped, tag = 'scoped memory for tpu_custom_call.1']
    #allocation5 [shape = 'u8[12288]{0}', space=vmem, size = 0x3000, scoped, tag = 'input window, operand 1, single buffered']
    #allocation6 [shape = 's32[1]{0}', space=sflag, size = 0x4, scoped, tag = 'scoped memory for tpu_custom_call.1']
    #allocation7 [shape = 'u8[4096]{0}', space=vmem, size = 0x1000, scoped, tag = 'input window, operand 3, single buffered']
    #allocation8 [shape = 'u8[4096]{0}', space=vmem, size = 0x1000, scoped, tag = 'output window, operand 0, single buffered']
    %9 = vsyncpa [#allocation3], 0
    %10 = vsyncpa [#allocation6], 0
    %11 = vsyncpa [#allocation4], 0
    // Predicated region
    $region2: #{tpu_custom_call.1} parent=1 // pred_check
      _
    $region3: #{tpu_custom_call.1} parent=1 // pred_check_branch
      %13 = sbr.rel (0) target = $region5
    $region4: #{tpu_custom_call.1} parent=1 // pred_region
      %15 = vsyncadd [#allocation3], 0
      %s16 = sshll.u32 %s0, 4
      %s17 = int_to_ptr.hbm [resolvable:$true] %s16
      %s18 = sshll.u32 [#allocation2], 4
      %s19 = int_to_ptr.vmem [resolvable:$true] %s18
      %24 = dma.hbm_to_vmem [thread:$0]  %s17, 512, %s19, [#allocation3], 64, 64, 4
    $region5: #{tpu_custom_call.1} parent=1 // pred_fallthru
      _
    // Predicated region
    $region6: #{tpu_custom_call.1} parent=1 // pred_check
      _
    $region7: #{tpu_custom_call.1} parent=1 // pred_check_branch
      %26 = sbr.rel (0) target = $region9
    $region8: #{tpu_custom_call.1} parent=1 // pred_region
      %28 = vsyncadd [#allocation6], 0
      %s29 = sshll.u32 %s1, 4
      %s30 = int_to_ptr.hbm [resolvable:$true] %s29
      %s31 = sshll.u32 [#allocation5], 4
      %s32 = int_to_ptr.vmem [resolvable:$true] %s31
      %37 = dma.hbm_to_vmem [thread:$0]  %s30, 384, %s32, [#allocation6], 64, 64, 4
    $region9: #{tpu_custom_call.1} parent=1 // pred_fallthru
      _
    // Predicated region
    $region10: #{tpu_custom_call.1} parent=1 // pred_check
      _
    $region11: #{tpu_custom_call.1} parent=1 // pred_check_branch
      %39 = sbr.rel (0) target = $region13
    $region12: #{tpu_custom_call.1} parent=1 // pred_region
      _
    $region13: #{tpu_custom_call.1} parent=1 // pred_fallthru
      _
    // Predicated region
    $region14: #{tpu_custom_call.1} parent=1 // pred_check
      _
    $region15: #{tpu_custom_call.1} parent=1 // pred_check_branch
      %41 = sbr.rel (0) target = $region17
    $region16: #{tpu_custom_call.1} parent=1 // pred_region
      %43 = vsyncadd [#allocation6], 0
      %s45 = sshll.u32 %s3, 4
      %s46 = int_to_ptr.hbm [resolvable:$true] %s45
      %s47 = sshll.u32 [#allocation7], 4
      %s48 = int_to_ptr.vmem [resolvable:$true] %s47
      %50 = dma.hbm_to_vmem [thread:$0]  %s46, 128, %s48, [#allocation6]
    $region17: #{tpu_custom_call.1} parent=1 // pred_fallthru
      _
    // Predicated region
    $region18: #{tpu_custom_call.1} parent=1 // pred_check
      _
    $region19: #{tpu_custom_call.1} parent=1 // pred_check_branch
      %52 = sbr.rel (0) target = $region21
    $region20: #{tpu_custom_call.1} parent=1 // pred_region
      %54 = dma.done [#allocation3], 512
    $region21: #{tpu_custom_call.1} parent=1 // pred_fallthru
      _
    // Predicated region
    $region22: #{tpu_custom_call.1} parent=1 // pred_check
      _
    $region23: #{tpu_custom_call.1} parent=1 // pred_check_branch
      %56 = sbr.rel (0) target = $region25
    $region24: #{tpu_custom_call.1} parent=1 // pred_region
      %58 = dma.done [#allocation6], 384
    $region25: #{tpu_custom_call.1} parent=1 // pred_fallthru
      _
    // Predicated region
    $region26: #{tpu_custom_call.1} parent=1 // pred_check
      _
    $region27: #{tpu_custom_call.1} parent=1 // pred_check_branch
      %60 = sbr.rel (0) target = $region29
    $region28: #{tpu_custom_call.1} parent=1 // pred_region
      %62 = dma.done [#allocation6], 128
    $region29: #{tpu_custom_call.1} parent=1 // pred_fallthru
      _
    %v64 = vld [vmem:[#allocation2] sm:$0xf]
    %v65 = vld [vmem:[#allocation2 + $0x4] sm:$0xf]
    %v66 = vld [vmem:[#allocation2 + $0x8] sm:$0xf]
    %v67 = vld [vmem:[#allocation2 + $0xc] sm:$0xf]
    %v68 = vld [vmem:[#allocation2 + $0x10] sm:$0xf]
    %v69 = vld [vmem:[#allocation2 + $0x14] sm:$0xf]
    %v70 = vld [vmem:[#allocation2 + $0x18] sm:$0xf]
    %v71 = vld [vmem:[#allocation2 + $0x1c] sm:$0xf]
    %v72 = vunpack.c.l.bf16 %v64
    %v73 = vunpack.c.l.bf16 %v65
    %v74 = vunpack.c.l.bf16 %v66
    %v75 = vunpack.c.l.bf16 %v67
    %v76 = vunpack.c.l.bf16 %v68
    %v77 = vunpack.c.l.bf16 %v69
    %v78 = vunpack.c.l.bf16 %v70
    %v79 = vunpack.c.l.bf16 %v71
    %v80 = vrot.slane %v72, 1
    %v81 = vrot.slane %v73, 1
    %v82 = vrot.slane %v74, 1
    %v83 = vrot.slane %v75, 1
    %v84 = vrot.slane %v76, 1
    %v85 = vrot.slane %v77, 1
    %v86 = vrot.slane %v78, 1
    %v87 = vrot.slane %v79, 1
    %v88 = vlaneseq
    %v89 = vshrl.u32 %v88, 7
    %vm90 = vcmp.lt.s32.totalorder %v89, 7
    %v91 = vsel %vm90, %v86, %v87
    %v92 = vsel %vm90, %v85, %v86
    %v93 = vsel %vm90, %v84, %v85
    %v94 = vsel %vm90, %v83, %v84
    %v95 = vsel %vm90, %v82, %v83
    %v96 = vsel %vm90, %v81, %v82
    %v97 = vsel %vm90, %v80, %v81
    %v98 = vsel %vm90, %v87, %v80
    %v99 = vrot.slane %v72, 2
    %v100 = vrot.slane %v73, 2
    %v101 = vrot.slane %v74, 2
    %v102 = vrot.slane %v75, 2
    %v103 = vrot.slane %v76, 2
    %v104 = vrot.slane %v77, 2
    %v105 = vrot.slane %v78, 2
    %v106 = vrot.slane %v79, 2
    %vm107 = vcmp.lt.s32.totalorder %v89, 6
    %v108 = vsel %vm107, %v105, %v106
    %v109 = vsel %vm107, %v104, %v105
    %v110 = vsel %vm107, %v103, %v104
    %v111 = vsel %vm107, %v102, %v103
    %v112 = vsel %vm107, %v101, %v102
    %v113 = vsel %vm107, %v100, %v101
    %v114 = vsel %vm107, %v99, %v100
    %v115 = vsel %vm107, %v106, %v99
    %124 = vrot.lane.b32.xlu0 %v97, 16
    %v125 = vpop.permute.xlu0 %124
    %126 = vrot.lane.b32.xlu0 %v96, 16
    %v127 = vpop.permute.xlu0 %126
    %128 = vrot.lane.b32.xlu0 %v95, 16
    %v129 = vpop.permute.xlu0 %128
    %130 = vrot.lane.b32.xlu0 %v94, 16
    %v131 = vpop.permute.xlu0 %130
    %132 = vrot.lane.b32.xlu0 %v93, 16
    %v133 = vpop.permute.xlu0 %132
    %134 = vrot.lane.b32.xlu0 %v92, 16
    %v135 = vpop.permute.xlu0 %134
    %136 = vrot.lane.b32.xlu0 %v91, 16
    %v137 = vpop.permute.xlu0 %136
    %138 = vrot.lane.b32.xlu0 %v98, 16
    %v139 = vpop.permute.xlu0 %138
    %156 = vrot.lane.b32.xlu0 %v114, 32
    %v157 = vpop.permute.xlu0 %156
    %158 = vrot.lane.b32.xlu0 %v113, 32
    %v159 = vpop.permute.xlu0 %158
    %160 = vrot.lane.b32.xlu0 %v112, 32
    %v161 = vpop.permute.xlu0 %160
    %162 = vrot.lane.b32.xlu0 %v111, 32
    %v163 = vpop.permute.xlu0 %162
    %164 = vrot.lane.b32.xlu0 %v110, 32
    %v165 = vpop.permute.xlu0 %164
    %166 = vrot.lane.b32.xlu0 %v109, 32
    %v167 = vpop.permute.xlu0 %166
    %168 = vrot.lane.b32.xlu0 %v108, 32
    %v169 = vpop.permute.xlu0 %168
    %170 = vrot.lane.b32.xlu0 %v115, 32
    %v171 = vpop.permute.xlu0 %170
    %vm180 = vcmask 130048
    %v181 = vsel %vm180, %v72, %v125
    %v182 = vsel %vm180, %v73, %v127
    %v183 = vsel %vm180, %v74, %v129
    %v184 = vsel %vm180, %v75, %v131
    %v185 = vsel %vm180, %v76, %v133
    %v186 = vsel %vm180, %v77, %v135
    %v187 = vsel %vm180, %v78, %v137
    %v188 = vsel %vm180, %v79, %v139
    %vm189 = vcmask 261120
    %v190 = vsel %vm189, %v181, %v157
    %v191 = vsel %vm189, %v182, %v159
    %v192 = vsel %vm189, %v183, %v161
    %v193 = vsel %vm189, %v184, %v163
    %v194 = vsel %vm189, %v185, %v165
    %v195 = vsel %vm189, %v186, %v167
    %v196 = vsel %vm189, %v187, %v169
    %v197 = vsel %vm189, %v188, %v171
    %v198 = vpack.c.bf16 %v191, %v190
    %v199 = vpack.c.bf16 %v193, %v192
    %v200 = vpack.c.bf16 %v195, %v194
    %v201 = vpack.c.bf16 %v197, %v196
    %v202 = vld [vmem:[#allocation5] sm:$0xf]
    %v203 = vld [vmem:[#allocation5 + $0x4] sm:$0xf]
    %v204 = vld [vmem:[#allocation5 + $0x8] sm:$0xf]
    %v205 = vld [vmem:[#allocation5 + $0xc] sm:$0xf]
    %v206 = vld [vmem:[#allocation5 + $0x10] sm:$0xf]
    %v207 = vld [vmem:[#allocation5 + $0x14] sm:$0xf]
    %v214 = vunpack.c.l.b16 %v202
    %v215 = vunpack.c.l.b16 %v203
    %v216 = vunpack.c.l.b16 %v204
    %v217 = vunpack.c.l.b16 %v205
    %v218 = vunpack.c.l.b16 %v206
    %v219 = vunpack.c.l.b16 %v207
    %v220 = vpack.c.b16 %v215, %v214
    %v221 = vpack.c.b16 %v217, %v216
    %v222 = vpack.c.b16 %v219, %v218
    %vm226 = vcmask 392192
    %v228 = vsel %vm226, %v198, 0
    %v231 = vsel %vm226, %v199, 0
    %v234 = vsel %vm226, %v200, 0
    %v237 = vsel %vm226, %v201, 0
    %239 = vmatpush.bf16.msra.mxu0 0
    %240 = vmatpush.bf16.msra.mxu0 0
    %241 = vmatpush.bf16.msra.mxu0 0
    %242 = vmatpush.bf16.msra.mxu0 0
    %243 = vmatpush.bf16.msra.mxu0 0
    %244 = vmatpush.bf16.msra.mxu0 %v222
    %245 = vmatpush.bf16.msra.mxu0 %v221
    %246 = vmatpush.bf16.msra.mxu0 %v220
    %247 = vmatmul.bf16.gmra.mxu0 %v228
    %v248 = vpop.f32.mrf.mxu0
    %v249 = vadd.f32 0.0, %v248
    %v250 = vpop.f32.mrf.mxu0
    %v251 = vadd.f32 0.0, %v250
    %252 = vmatmul.bf16.gmra.mxu0 %v231
    %v253 = vpop.f32.mrf.mxu0
    %v254 = vadd.f32 0.0, %v253
    %v255 = vpop.f32.mrf.mxu0
    %v256 = vadd.f32 0.0, %v255
    %257 = vmatmul.bf16.gmra.mxu0 %v234
    %v258 = vpop.f32.mrf.mxu0
    %v259 = vadd.f32 0.0, %v258
    %v260 = vpop.f32.mrf.mxu0
    %v261 = vadd.f32 0.0, %v260
    %262 = vmatmul.bf16.gmra.mxu0 %v237
    %v263 = vpop.f32.mrf.mxu0
    %v264 = vadd.f32 0.0, %v263
    %v265 = vpop.f32.mrf.mxu0
    %v266 = vadd.f32 0.0, %v265
    %267 = vdwg.mxu0
    %v268 = vld [vmem:[#allocation7] sm:$0xff]
    %v269 = vadd.f32 %v249, %v268
    %v270 = vadd.f32 %v251, %v268
    %v271 = vadd.f32 %v254, %v268
    %v272 = vadd.f32 %v256, %v268
    %v273 = vadd.f32 %v259, %v268
    %v274 = vadd.f32 %v261, %v268
    %v275 = vadd.f32 %v264, %v268
    %v276 = vadd.f32 %v266, %v268
    %v277 = vrot.slane %v269, 4
    %v278 = vmax.f32 %v269, %v277
    %v279 = vrot.slane %v278, 2
    %v280 = vmax.f32 %v278, %v279
    %v281 = vrot.slane %v280, 1
    %v282 = vmax.f32 %v280, %v281
    %v283 = vrot.slane %v270, 4
    %v284 = vmax.f32 %v270, %v283
    %v285 = vrot.slane %v284, 2
    %v286 = vmax.f32 %v284, %v285
    %v287 = vrot.slane %v286, 1
    %v288 = vmax.f32 %v286, %v287
    %v289 = vrot.slane %v271, 4
    %v290 = vmax.f32 %v271, %v289
    %v291 = vrot.slane %v290, 2
    %v292 = vmax.f32 %v290, %v291
    %v293 = vrot.slane %v292, 1
    %v294 = vmax.f32 %v292, %v293
    %v295 = vrot.slane %v272, 4
    %v296 = vmax.f32 %v272, %v295
    %v297 = vrot.slane %v296, 2
    %v298 = vmax.f32 %v296, %v297
    %v299 = vrot.slane %v298, 1
    %v300 = vmax.f32 %v298, %v299
    %v301 = vrot.slane %v273, 4
    %v302 = vmax.f32 %v273, %v301
    %v303 = vrot.slane %v302, 2
    %v304 = vmax.f32 %v302, %v303
    %v305 = vrot.slane %v304, 1
    %v306 = vmax.f32 %v304, %v305
    %v307 = vrot.slane %v274, 4
    %v308 = vmax.f32 %v274, %v307
    %v309 = vrot.slane %v308, 2
    %v310 = vmax.f32 %v308, %v309
    %v311 = vrot.slane %v310, 1
    %v312 = vmax.f32 %v310, %v311
    %v313 = vrot.slane %v275, 4
    %v314 = vmax.f32 %v275, %v313
    %v315 = vrot.slane %v314, 2
    %v316 = vmax.f32 %v314, %v315
    %v317 = vrot.slane %v316, 1
    %v318 = vmax.f32 %v316, %v317
    %v319 = vrot.slane %v276, 4
    %v320 = vmax.f32 %v276, %v319
    %v321 = vrot.slane %v320, 2
    %v322 = vmax.f32 %v320, %v321
    %v323 = vrot.slane %v322, 1
    %v324 = vmax.f32 %v322, %v323
    %v325 = vld [vmem:[%s2] sm:$0x1]
    %v327 = vperm.slane %v325, 0
    %v329 = vadd.f32 %v282, %v327
    %v330 = vadd.f32 %v288, %v327
    %v331 = vadd.f32 %v294, %v327
    %v332 = vadd.f32 %v300, %v327
    %v333 = vadd.f32 %v306, %v327
    %v334 = vadd.f32 %v312, %v327
    %v335 = vadd.f32 %v318, %v327
    %v336 = vadd.f32 %v324, %v327
    %v337 = vtanh.pop %v329
    %v338 = vtanh.pop %v330
    %v339 = vtanh.pop %v331
    %v340 = vtanh.pop %v332
    %v341 = vtanh.pop %v333
    %v342 = vtanh.pop %v334
    %v343 = vtanh.pop %v335
    %v344 = vtanh.pop %v336
    %v353 = vrot.slane %v338, 7
    %vm354 = vcmask 1041409
    %v355 = vsel %vm354, %v353, %v337
    %v356 = vrot.slane %v339, 6
    %vm357 = vcmask 1042434
    %v358 = vsel %vm357, %v356, %v355
    %v359 = vrot.slane %v340, 5
    %vm360 = vcmask 1043459
    %v361 = vsel %vm360, %v359, %v358
    %v362 = vrot.slane %v341, 4
    %vm363 = vcmask 1044484
    %v364 = vsel %vm363, %v362, %v361
    %v365 = vrot.slane %v342, 3
    %vm366 = vcmask 1045509
    %v367 = vsel %vm366, %v365, %v364
    %v368 = vrot.slane %v343, 2
    %vm369 = vcmask 1046534
    %v370 = vsel %vm369, %v368, %v367
    %v371 = vrot.slane %v344, 1
    %vm372 = vcmask 1047559
    %v373 = vsel %vm372, %v371, %v370
    %375 = vst [vmem:[#allocation8] sm:$0xff] %v373
    // Predicated region
    $region30: #{tpu_custom_call.1} parent=1 // pred_check
      _
    $region31: #{tpu_custom_call.1} parent=1 // pred_check_branch
      %377 = sbr.rel (0) target = $region33
    $region32: #{tpu_custom_call.1} parent=1 // pred_region
      %379 = vsyncadd [#allocation4], 0
      %s381 = sshll.u32 [#allocation8], 4
      %s382 = int_to_ptr.vmem [resolvable:$true] %s381
      %s383 = sshll.u32 %s4, 4
      %s384 = int_to_ptr.hbm [resolvable:$true] %s383
      %386 = dma.vmem_to_hbm [thread:$0]  %s382, 128, %s384, [#allocation4]
    $region33: #{tpu_custom_call.1} parent=1 // pred_fallthru
      _
    // Predicated region
    $region34: #{tpu_custom_call.1} parent=1 // pred_check
      _
    $region35: #{tpu_custom_call.1} parent=1 // pred_check_branch
      %388 = sbr.rel (0) target = $region37
    $region36: #{tpu_custom_call.1} parent=1 // pred_region
      %390 = dma.done [#allocation4], 128
    $region37: #{tpu_custom_call.1} parent=1 // pred_fallthru
      _
    %391 = vsyncpa [#allocation3], 1
    %392 = vsyncpa [#allocation6], 1
    %393 = vsyncpa [#allocation4], 1

</llo_original>
